<compile_context>
chip_gen: v5e
topology: v5e:2x2
jax: 0.10.0
libtpu: 0.0.40
codegen_flags: <defaults>
</compile_context>

<pallas_src>
import jax
import jax.numpy as jnp
from jax.experimental import pallas as pl
from jax.experimental.pallas import tpu as pltpu


def _build_pos_table(num_hiddens: int, max_len: int = 1000,
                     dtype=jnp.float32) -> jnp.ndarray:
    """Replicates PositionalEncoding.__init__: P of shape (1, max_len, D)."""
    pos = jnp.arange(max_len, dtype=jnp.float32)[:, None]                  # (L, 1)
    idx = jnp.arange(0, num_hiddens, 2, dtype=jnp.float32)                 # (ceil(D/2),)
    angles = pos / jnp.power(10000.0, idx / num_hiddens)                   # (L, ceil(D/2))
    p = jnp.zeros((max_len, num_hiddens), jnp.float32)
    p = p.at[:, 0::2].set(jnp.sin(angles))
    # cos columns: floor(D/2) of them (truncates the extra column for odd D).
    p = p.at[:, 1::2].set(jnp.cos(angles)[:, : num_hiddens // 2])
    return p[None].astype(dtype)                                           # (1, L, D)


def _add_pe_kernel(x_ref, p_ref, o_ref):
    # x_ref: (TB, TC) tile of flattened X; p_ref: (1, TC) matching slice of
    # flattened P (sublane-broadcast over the TB batch rows); o_ref: (TB, TC).
    o_ref[...] = x_ref[...] + p_ref[...]
    # TODO(synk): for dropout p > 0, fuse pltpu.prng_seed + prng_random_bits
    # mask/scale here (same pass) instead of a second kernel over (B, S, D).


_TARGET_BLOCK_BYTES = 2 * 1024 * 1024  # ~2 MiB per pipelined block


def _choose_tiles(batch: int, flat: int, itemsize: int):
    """Pick (row_tile, col_tile) obeying the (8, 128) block constraints."""
    # Column (lane) tile: full flattened row if small, else a multiple of 128.
    if flat * itemsize * 8 <= _TARGET_BLOCK_BYTES or flat <= 128:
        tc = flat                                     # equals full dim -> legal
    else:
        tc = max(128, (_TARGET_BLOCK_BYTES // (8 * itemsize)) // 128 * 128)
    # Row (sublane) tile: multiple of 8, or the full batch dim.
    rows_budget = max(1, _TARGET_BLOCK_BYTES // (tc * itemsize))
    if rows_budget >= batch or batch <= 8:
        tb = batch                                    # equals full dim -> legal
    else:
        tb = max(8, (rows_budget // 8) * 8)
    return tb, tc


def positional_encoding_forward(x: jnp.ndarray, p_table: jnp.ndarray) -> jnp.ndarray:
    """x: (B, S, D); p_table: (1, max_len, D). Returns x + P[:, :S, :]."""
    B, S, D = x.shape
    max_len = p_table.shape[1]
    if S > max_len:
        raise ValueError(f"sequence length {S} exceeds max_len {max_len}")

    F = S * D
    itemsize = jnp.dtype(x.dtype).itemsize
    # Lane-dense flattening (row-major reshape is free) + explicit dtype cast.
    xf = x.reshape(B, F)
    pf = p_table[0, :S, :].astype(x.dtype).reshape(1, F)

    tb, tc = _choose_tiles(B, F, itemsize)
    n_row_blocks = pl.cdiv(B, tb)
    n_col_blocks = pl.cdiv(F, tc)
    # Column axis OUTER so P's block index is constant across inner (row)
    # steps -> Pallas skips re-DMA of the P tile between those steps.
    grid = (n_col_blocks, n_row_blocks)

    out = pl.pallas_call(
        _add_pe_kernel,
        out_shape=jax.ShapeDtypeStruct((B, F), x.dtype),
        grid_spec=pltpu.PrefetchScalarGridSpec(
            num_scalar_prefetch=0,
            grid=grid,
            in_specs=[
                pl.BlockSpec((tb, tc), lambda j, i: (i, j)),   # X tile
                pl.BlockSpec((1, tc), lambda j, i: (0, j)),    # P (batch-broadcast)
            ],
            out_specs=pl.BlockSpec((tb, tc), lambda j, i: (i, j)),
        ),
        compiler_params=pltpu.CompilerParams(
            dimension_semantics=("parallel", "parallel"),
            vmem_limit_bytes=32 * 1024 * 1024,
        ),
        cost_estimate=pl.CostEstimate(
            flops=int(B * F),
            transcendentals=0,
            # X read + out write + P read once per column block.
            bytes_accessed=int((2 * B * F + n_row_blocks * F) * itemsize),
        ),
    )(xf, pf)
    # Dropout with p=0.0 (as in the reference construction) is the identity.
    return out.reshape(B, S, D)


def _check(x, p_table, atol):
    out = jax.block_until_ready(positional_encoding_forward(x, p_table))
    ref = x + p_table[:, : x.shape[1], :].astype(x.dtype)
    assert out.shape == x.shape
    assert jnp.allclose(out, ref, atol=atol), "mismatch vs reference"
    return out


if __name__ == "__main__":
    key = jax.random.PRNGKey(0)

    # --- Toy shape matching the module example (batch, num_steps, encoding_dim).
    batch, num_steps, encoding_dim = 2, 8, 32
    p_table = _build_pos_table(encoding_dim, max_len=1000)

    k1, k2 = jax.random.split(key)
    x_f32 = jax.random.normal(k1, (batch, num_steps, encoding_dim), jnp.float32)
    _check(x_f32, p_table, atol=1e-6)

    # --- Spec-literal case: X = zeros((1, num_steps, encoding_dim)) -> out == P.
    x_zeros = jnp.zeros((1, num_steps, encoding_dim), jnp.float32)
    _check(x_zeros, p_table, atol=1e-6)

    # --- bf16 path (halved HBM traffic; P cast inside the wrapper).
    x_bf16 = x_f32.astype(jnp.bfloat16)
    _check(x_bf16, p_table, atol=1e-2)

    # --- Larger shape exercising row + column tiling (multi-block grid).
    big_B, big_S, big_D = 16, 512, 512
    p_big = _build_pos_table(big_D, max_len=big_S)
    x_big = jax.random.normal(k2, (big_B, big_S, big_D), jnp.float32)
    _check(x_big, p_big, atol=1e-6)

    print("KERNEL_OK")
</pallas_src>

<mosaic_0001>
module attributes {stable_mosaic.version = 11 : i64} {
  func.func @_add_pe_kernel(%arg0: i32, %arg1: i32, %arg2: memref<2x256xf32, #tpu.memory_space<vmem>>, %arg3: memref<1x256xf32, #tpu.memory_space<vmem>>, %arg4: memref<2x256xf32, #tpu.memory_space<vmem>>) attributes {dimension_semantics = [#tpu.dimension_semantics<parallel>, #tpu.dimension_semantics<parallel>], iteration_bounds = array<i64: 1, 1>, scalar_prefetch = 0 : i64, scratch_operands = 0 : i64, tpu.core_type = #tpu.core_type<tc>, window_params = [{transform_indices = @transform_0, window_bounds = array<i64: 2, 256>}, {transform_indices = @transform_1, window_bounds = array<i64: 1, 256>}, {transform_indices = @transform_2, window_bounds = array<i64: 2, 256>}]} {
    %c0 = arith.constant 0 : index
    %c0_0 = arith.constant 0 : index
    %0 = vector.load %arg2[%c0, %c0_0] : memref<2x256xf32, #tpu.memory_space<vmem>>, vector<2x256xf32>
    %c0_1 = arith.constant 0 : index
    %c0_2 = arith.constant 0 : index
    %1 = vector.load %arg3[%c0_1, %c0_2] : memref<1x256xf32, #tpu.memory_space<vmem>>, vector<1x256xf32>
    %2 = vector.broadcast %1 : vector<1x256xf32> to vector<2x256xf32>
    %3 = arith.addf %0, %2 : vector<2x256xf32>
    %c0_3 = arith.constant 0 : index
    %c0_4 = arith.constant 0 : index
    %4 = vector.load %arg4[%c0_3, %c0_4] : memref<2x256xf32, #tpu.memory_space<vmem>>, vector<2x256xf32>
    tpu.vector_store %arg4[%c0_3, %c0_4], %3 {strides = array<i32>} : memref<2x256xf32, #tpu.memory_space<vmem>>, vector<2x256xf32>,
    return
  }
  func.func @transform_0(%arg0: i32, %arg1: i32) -> (i32, i32) {
    %c0_i32 = arith.constant 0 : i32
    return %arg1, %arg0 : i32, i32
  }
  func.func @transform_1(%arg0: i32, %arg1: i32) -> (i32, i32) {
    %c0_i32 = arith.constant 0 : i32
    %c0_i32_0 = arith.constant 0 : i32
    return %c0_i32, %arg0 : i32, i32
  }
  func.func @transform_2(%arg0: i32, %arg1: i32) -> (i32, i32) {
    %c0_i32 = arith.constant 0 : i32
    return %arg1, %arg0 : i32, i32
  }
}

</mosaic_0001>

<llo_original>
// kernel: tpu_custom_call.1
$region0: #{tpu_custom_call.1}
  #allocation0 [shape = 'u32[]', space=smem, size = 0x4, offset = 0x4, fixed_abs, tag = 'smem constant byte address 0x4 - core index']
  #allocation1 [shape = 'u32[72,128]{1,0:T(1,128)}', space=vmem, size = 0x9000, scoped, tag = 'internal scratch']
  %s0 = inlined_call_operand.hbm [shape: f32[2,256], index: 0, kind: input, shape index: {}]
  %s1 = inlined_call_operand.hbm [shape: f32[1,256], index: 1, kind: input, shape index: {}]
  %s2 = inlined_call_operand.hbm [shape: f32[2,256], index: 2, kind: output, shape index: {}]
  %s3 = sld [smem:[#allocation0]]
  $region26: #{tpu_custom_call.1} parent=0
    _
  %s5 = ssub.s32 1, %s3
  %s6 = scalar_select 0, %s5, %s3
  $region1: #{tpu_custom_call.1} parent=0
    #allocation2 [shape = 'u8[2048]{0}', space=vmem, size = 0x800, scoped, tag = 'input window, operand 0, single buffered']
    #allocation3 [shape = 's32[1]{0}', space=sflag, size = 0x4, scoped, tag = 'scoped memory for tpu_custom_call.1']
    #allocation4 [shape = 's32[1]{0}', space=sflag, size = 0x4, scoped, tag = 'scoped memory for tpu_custom_call.1']
    #allocation5 [shape = 'u8[1024]{0}', space=vmem, size = 0x400, scoped, tag = 'input window, operand 1, single buffered']
    #allocation6 [shape = 's32[1]{0}', space=sflag, size = 0x4, scoped, tag = 'scoped memory for tpu_custom_call.1']
    #allocation7 [shape = 'u8[2048]{0}', space=vmem, size = 0x800, scoped, tag = 'output window, operand 0, single buffered']
    %7 = vsyncpa [#allocation3], 0
    %8 = vsyncpa [#allocation6], 0
    %9 = vsyncpa [#allocation4], 0
    // Predicated region
    $region2: #{tpu_custom_call.1} parent=1 // pred_check
      _
    $region3: #{tpu_custom_call.1} parent=1 // pred_check_branch
      %11 = sbr.rel (0) target = $region5
    $region4: #{tpu_custom_call.1} parent=1 // pred_region
      %13 = vsyncadd [#allocation3], 0
      %s15 = sshll.u32 %s0, 4
      %s16 = int_to_ptr.hbm [resolvable:$true] %s15
      %s17 = sshll.u32 [#allocation2], 4
      %s18 = int_to_ptr.vmem [resolvable:$true] %s17
      %20 = dma.hbm_to_vmem [thread:$0]  %s16, 64, %s18, [#allocation3]
    $region5: #{tpu_custom_call.1} parent=1 // pred_fallthru
      _
    // Predicated region
    $region6: #{tpu_custom_call.1} parent=1 // pred_check
      _
    $region7: #{tpu_custom_call.1} parent=1 // pred_check_branch
      %22 = sbr.rel (0) target = $region9
    $region8: #{tpu_custom_call.1} parent=1 // pred_region
      %24 = vsyncadd [#allocation6], 0
      %s26 = sshll.u32 %s1, 4
      %s27 = int_to_ptr.hbm [resolvable:$true] %s26
      %s28 = sshll.u32 [#allocation5], 4
      %s29 = int_to_ptr.vmem [resolvable:$true] %s28
      %31 = dma.hbm_to_vmem [thread:$0]  %s27, 32, %s29, [#allocation6]
    $region9: #{tpu_custom_call.1} parent=1 // pred_fallthru
      _
    // Predicated region
    $region10: #{tpu_custom_call.1} parent=1 // pred_check
      _
    $region11: #{tpu_custom_call.1} parent=1 // pred_check_branch
      %33 = sbr.rel (0) target = $region13
    $region12: #{tpu_custom_call.1} parent=1 // pred_region
      %35 = dma.done [#allocation3], 64
    $region13: #{tpu_custom_call.1} parent=1 // pred_fallthru
      _
    // Predicated region
    $region14: #{tpu_custom_call.1} parent=1 // pred_check
      _
    $region15: #{tpu_custom_call.1} parent=1 // pred_check_branch
      %37 = sbr.rel (0) target = $region17
    $region16: #{tpu_custom_call.1} parent=1 // pred_region
      %39 = dma.done [#allocation6], 32
    $region17: #{tpu_custom_call.1} parent=1 // pred_fallthru
      _
    %v40 = vld [vmem:[#allocation2] sm:$0xf]
    %v41 = vld [vmem:[#allocation5] sm:$0x3]
    %v43 = vperm.slane %v41, 0
    %v44 = vperm.slane %v41, 1
    %v45 = vrot.slane %v44, 6
    %vm46 = vcmask 1041408
    %v47 = vsel %vm46, %v43, %v45
    %v49 = vadd.f32 %v40, %v47
    %50 = vst [vmem:[#allocation7] sm:$0xf] %v49
    // Predicated region
    $region18: #{tpu_custom_call.1} parent=1 // pred_check
      _
    $region19: #{tpu_custom_call.1} parent=1 // pred_check_branch
      %52 = sbr.rel (0) target = $region21
    $region20: #{tpu_custom_call.1} parent=1 // pred_region
      %54 = vsyncadd [#allocation4], 0
      %s56 = sshll.u32 [#allocation7], 4
      %s57 = int_to_ptr.vmem [resolvable:$true] %s56
      %s58 = sshll.u32 %s2, 4
      %s59 = int_to_ptr.hbm [resolvable:$true] %s58
      %61 = dma.vmem_to_hbm [thread:$0]  %s57, 64, %s59, [#allocation4]
    $region21: #{tpu_custom_call.1} parent=1 // pred_fallthru
      _
    // Predicated region
    $region22: #{tpu_custom_call.1} parent=1 // pred_check
      _
    $region23: #{tpu_custom_call.1} parent=1 // pred_check_branch
      %63 = sbr.rel (0) target = $region25
    $region24: #{tpu_custom_call.1} parent=1 // pred_region
      %65 = dma.done [#allocation4], 64
    $region25: #{tpu_custom_call.1} parent=1 // pred_fallthru
      _
    %66 = vsyncpa [#allocation3], 1
    %67 = vsyncpa [#allocation6], 1
    %68 = vsyncpa [#allocation4], 1

</llo_original>
